<compile_context>
chip_gen: v6e
topology: v6e:2x2x1
jax: 0.10.0
libtpu: 0.0.40
codegen_flags: <defaults>
</compile_context>

<pallas_src>
import jax
import jax.numpy as jnp
from jax import lax
from jax.experimental import pallas as pl
from jax.experimental.pallas import tpu as pltpu


def _round_up(a, b):
    return -(-a // b) * b


def _sublane(itemsize):
    # sublane packing quantum: f32/i32 -> 8, bf16 -> 16, int8/fp8 -> 32
    return 8 * max(1, 4 // itemsize)


def _spatial_kernel(x_ref, o_ref):
    """x_ref: (N, C, T) tile of the flattened-spatial input; o_ref: (N, C+1, T)."""
    n, c, t = x_ref.shape
    inv_n = 1.0 / n

    # Two-pass stats streamed over the batch axis: only (C, T) f32 accumulators are live
    # (no full-block f32 temporary), matching the torch two-pass mean((x-mean)^2) numerics.
    def sum_body(i, acc):
        return acc + x_ref[i].astype(jnp.float32)

    mean = lax.fori_loop(0, n, sum_body, jnp.zeros((c, t), jnp.float32),
                         unroll=True) * inv_n

    def sq_body(i, acc):
        d = x_ref[i].astype(jnp.float32) - mean
        return acc + d * d

    var = lax.fori_loop(0, n, sq_body, jnp.zeros((c, t), jnp.float32),
                        unroll=True) * inv_n
    std = jnp.sqrt(var + 1e-8)                       # (C, T)  biased (/N) std + eps, as in torch
    vals = jnp.mean(std, axis=0, keepdims=True)      # (1, T)  channel mean (averaging='all')

    # NOTE: on a partial last tile the padded lanes hold garbage stats; that is correct only
    # because there is no cross-spatial reduction (padded output lanes are discarded on writeback).
    o_ref[:, :c, :] = x_ref[...]                     # passthrough channels in native dtype
    o_ref[:, c:, :] = jnp.broadcast_to(vals[None], (n, 1, t)).astype(o_ref.dtype)


def _small_hw_kernel(x3_ref, xflat_ref, o_ref):
    """x3_ref: (N, C, HW) stats view; xflat_ref: (N, C*HW) lane-dense; o_ref: (N, (C+1)*HW)."""
    n, c, hw = x3_ref.shape
    chw = c * hw
    inv_n = 1.0 / n

    def sum_body(i, acc):
        return acc + x3_ref[i].astype(jnp.float32)

    mean = lax.fori_loop(0, n, sum_body, jnp.zeros((c, hw), jnp.float32),
                         unroll=True) * inv_n

    def sq_body(i, acc):
        d = x3_ref[i].astype(jnp.float32) - mean
        return acc + d * d

    var = lax.fori_loop(0, n, sq_body, jnp.zeros((c, hw), jnp.float32),
                        unroll=True) * inv_n
    std = jnp.sqrt(var + 1e-8)                       # (C, HW)
    vals = jnp.mean(std, axis=0, keepdims=True)      # (1, HW)  channel mean

    # Bulk of the bytes: dense lane-aligned copy. Only the tiny HW-wide stats write is masked.
    o_ref[:, :chw] = xflat_ref[...]
    o_ref[:, chw:] = jnp.broadcast_to(vals, (n, hw)).astype(o_ref.dtype)


def batch_std_concat(x, vmem_block_budget=20 * 1024 * 1024):
    """BatchStdConcat(averaging='all'). x: [N, C, H, W] -> [N, C+1, H, W]."""
    n, c, h, w = x.shape
    hw = h * w
    dtype = x.dtype
    itemsize = jnp.dtype(dtype).itemsize
    sub = _sublane(itemsize)
    cpad_in = _round_up(c, sub)
    cpad_out = _round_up(c + 1, sub)
    # Raise v5e's 16 MiB scoped default; 32 MiB is still safe inside v7x's 64 MiB physical VMEM.
    vmem_limit = 32 * 1024 * 1024

    if hw >= 128:
        # ---- large spatial extent: 1-D grid over the flattened (lane-dense) spatial axis ----
        x_flat = x.reshape(n, c, hw)

        # VMEM bytes per lane of T: double-buffered in+out blocks (with sublane padding of the
        # channel axis) plus the streamed f32 stats temporaries (mean, accumulator, std).
        per_lane = 2 * n * (cpad_in + cpad_out) * itemsize + 3 * _round_up(c, 8) * 4
        t = max(128, (vmem_block_budget // per_lane) // 128 * 128)
        t = min(t, _round_up(hw, 128))
        if t > hw:
            t = hw  # hw not a multiple of 128: single full-extent block is the legal shape

        # Give v7x's two TensorCores several tiles to split, but keep each grid step's HBM
        # traffic >= ~2 MiB so the ~0.35us fixed per-step cost stays small on all generations.
        hbm_per_lane = n * (2 * c + 1) * itemsize
        for tiles in (8, 4, 2):
            cand = _round_up(pl.cdiv(hw, tiles), 128)
            if cand < t and cand * hbm_per_lane >= (2 << 20):
                t = cand
                break
        if pl.cdiv(hw, t) < 2 and hw > 128:
            # Small tensor: still split in two so both v7x cores get work (cheap on 1-TC chips).
            t = _round_up(pl.cdiv(hw, 2), 128)

        grid = (pl.cdiv(hw, t),)
        cost = pl.CostEstimate(
            flops=8 * n * c * hw,
            transcendentals=c * hw,
            bytes_accessed=(n * c + n * (c + 1)) * hw * itemsize,
        )
        out_flat = pl.pallas_call(
            _spatial_kernel,
            out_shape=jax.ShapeDtypeStruct((n, c + 1, hw), dtype),
            grid=grid,
            in_specs=[pl.BlockSpec((n, c, t), lambda i: (0, 0, i))],
            out_specs=pl.BlockSpec((n, c + 1, t), lambda i: (0, 0, i)),
            compiler_params=pltpu.CompilerParams(
                dimension_semantics=("parallel",),   # spatial tiles are fully independent
                vmem_limit_bytes=vmem_limit,
            ),
            cost_estimate=cost,
        )(x_flat)
        return out_flat.reshape(n, c + 1, h, w)

    # ---- small spatial extent (canonical minibatch-stddev shape, e.g. 4x4 with large C) ----
    # Lane-dense passthrough via (N, C*HW); the (N, C, HW) view feeds only the stats path.
    # TODO(synk): extremely large N*C with tiny HW would need C-tiling plus a cross-tile
    # channel-mean reduction (output-resident accumulator); not implemented here.
    x3 = x.reshape(n, c, hw)
    x_flat = x.reshape(n, c * hw)
    cost = pl.CostEstimate(
        flops=8 * n * c * hw,
        transcendentals=c * hw,
        bytes_accessed=(2 * n * c + n * (c + 1)) * hw * itemsize,
    )
    out_flat = pl.pallas_call(
        _small_hw_kernel,
        out_shape=jax.ShapeDtypeStruct((n, (c + 1) * hw), dtype),
        grid=(1,),
        in_specs=[pl.BlockSpec((n, c, hw), lambda i: (0, 0, 0)),
                  pl.BlockSpec((n, c * hw), lambda i: (0, 0))],
        out_specs=pl.BlockSpec((n, (c + 1) * hw), lambda i: (0, 0)),
        compiler_params=pltpu.CompilerParams(
            dimension_semantics=("arbitrary",),
            vmem_limit_bytes=vmem_limit,
        ),
        cost_estimate=cost,
    )(x3, x_flat)
    return out_flat.reshape(n, c + 1, h, w)


def _reference(x):
    # Pure-JAX reference mirroring the PyTorch forward (averaging='all').
    mean_b = jnp.mean(x, axis=0, keepdims=True)
    std_b = jnp.sqrt(jnp.mean((x - mean_b) ** 2, axis=0, keepdims=True) + 1e-8)
    vals = jnp.mean(std_b, axis=1, keepdims=True)            # [1, 1, H, W]
    vals = jnp.broadcast_to(vals, (x.shape[0], 1, x.shape[2], x.shape[3]))
    return jnp.concatenate([x, vals], axis=1)


if __name__ == "__main__":
    key = jax.random.PRNGKey(0)

    # Primary shape from the module spec: N=2, C=4, 16x16 spatial (hw=256 -> tiled spatial path).
    N, C, H, W = 2, 4, 16, 16
    x = jax.random.normal(key, (N, C, H, W), dtype=jnp.float32)
    out = jax.block_until_ready(batch_std_concat(x))
    ref = _reference(x)
    assert out.shape == (N, C + 1, H, W), out.shape
    assert jnp.allclose(out, ref, atol=1e-5, rtol=1e-5), "mismatch vs reference (spatial path)"

    # Canonical minibatch-stddev shape: tiny spatial extent -> lane-dense flattened path.
    x2 = jax.random.normal(jax.random.PRNGKey(0), (2, 64, 4, 4), dtype=jnp.float32)
    out2 = jax.block_until_ready(batch_std_concat(x2))
    ref2 = _reference(x2)
    assert out2.shape == (2, 65, 4, 4), out2.shape
    assert jnp.allclose(out2, ref2, atol=1e-5, rtol=1e-5), "mismatch vs reference (small-hw path)"

    print("KERNEL_OK")
</pallas_src>

<mosaic_0001>
module attributes {stable_mosaic.version = 11 : i64} {
  func.func @_spatial_kernel(%arg0: i32, %arg1: memref<2x4x128xf32, #tpu.memory_space<vmem>>, %arg2: memref<2x5x128xf32, #tpu.memory_space<vmem>>) attributes {dimension_semantics = [#tpu.dimension_semantics<parallel>], iteration_bounds = array<i64: 2>, scalar_prefetch = 0 : i64, scratch_operands = 0 : i64, tpu.core_type = #tpu.core_type<tc>, window_params = [{transform_indices = @transform_0, window_bounds = array<i64: 2, 4, 128>}, {transform_indices = @transform_1, window_bounds = array<i64: 2, 5, 128>}]} {
    %cst = arith.constant 0.000000e+00 : f32
    %0 = vector.broadcast %cst : f32 to vector<4x128xf32>
    %c0_i32 = arith.constant 0 : i32
    %1 = arith.index_cast %c0_i32 : i32 to index
    %c0 = arith.constant 0 : index
    %c0_0 = arith.constant 0 : index
    %2 = vector.load %arg1[%1, %c0, %c0_0] : memref<2x4x128xf32, #tpu.memory_space<vmem>>, vector<1x4x128xf32>
    %3 = vector.shape_cast %2 : vector<1x4x128xf32> to vector<4x128xf32>
    %4 = arith.addf %0, %3 : vector<4x128xf32>
    %c1_i32 = arith.constant 1 : i32
    %5 = arith.index_cast %c1_i32 : i32 to index
    %c0_1 = arith.constant 0 : index
    %c0_2 = arith.constant 0 : index
    %6 = vector.load %arg1[%5, %c0_1, %c0_2] : memref<2x4x128xf32, #tpu.memory_space<vmem>>, vector<1x4x128xf32>
    %7 = vector.shape_cast %6 : vector<1x4x128xf32> to vector<4x128xf32>
    %8 = arith.addf %4, %7 : vector<4x128xf32>
    %c2_i32 = arith.constant 2 : i32
    %cst_3 = arith.constant 5.000000e-01 : f32
    %9 = vector.broadcast %cst_3 : f32 to vector<4x128xf32>
    %10 = arith.mulf %8, %9 : vector<4x128xf32>
    %cst_4 = arith.constant 0.000000e+00 : f32
    %11 = vector.broadcast %cst_4 : f32 to vector<4x128xf32>
    %c0_i32_5 = arith.constant 0 : i32
    %12 = arith.index_cast %c0_i32_5 : i32 to index
    %c0_6 = arith.constant 0 : index
    %c0_7 = arith.constant 0 : index
    %13 = vector.load %arg1[%12, %c0_6, %c0_7] : memref<2x4x128xf32, #tpu.memory_space<vmem>>, vector<1x4x128xf32>
    %14 = vector.shape_cast %13 : vector<1x4x128xf32> to vector<4x128xf32>
    %15 = arith.subf %14, %10 : vector<4x128xf32>
    %16 = arith.mulf %15, %15 : vector<4x128xf32>
    %17 = arith.addf %11, %16 : vector<4x128xf32>
    %c1_i32_8 = arith.constant 1 : i32
    %18 = arith.index_cast %c1_i32_8 : i32 to index
    %c0_9 = arith.constant 0 : index
    %c0_10 = arith.constant 0 : index
    %19 = vector.load %arg1[%18, %c0_9, %c0_10] : memref<2x4x128xf32, #tpu.memory_space<vmem>>, vector<1x4x128xf32>
    %20 = vector.shape_cast %19 : vector<1x4x128xf32> to vector<4x128xf32>
    %21 = arith.subf %20, %10 : vector<4x128xf32>
    %22 = arith.mulf %21, %21 : vector<4x128xf32>
    %23 = arith.addf %17, %22 : vector<4x128xf32>
    %c2_i32_11 = arith.constant 2 : i32
    %cst_12 = arith.constant 5.000000e-01 : f32
    %24 = vector.broadcast %cst_12 : f32 to vector<4x128xf32>
    %25 = arith.mulf %23, %24 : vector<4x128xf32>
    %cst_13 = arith.constant 9.99999993E-9 : f32
    %26 = vector.broadcast %cst_13 : f32 to vector<4x128xf32>
    %27 = arith.addf %25, %26 : vector<4x128xf32>
    %28 = math.sqrt %27 : vector<4x128xf32>
    %cst_14 = arith.constant dense<0.000000e+00> : vector<128xf32>
    %29 = vector.multi_reduction <add>, %28, %cst_14 [0] : vector<4x128xf32> to vector<128xf32>
    %30 = vector.shape_cast %29 : vector<128xf32> to vector<1x128xf32>
    %cst_15 = arith.constant 4.000000e+00 : f32
    %31 = vector.broadcast %cst_15 : f32 to vector<1x128xf32>
    %32 = arith.divf %30, %31 : vector<1x128xf32>
    %c0_16 = arith.constant 0 : index
    %c0_17 = arith.constant 0 : index
    %c0_18 = arith.constant 0 : index
    %33 = vector.load %arg1[%c0_16, %c0_17, %c0_18] : memref<2x4x128xf32, #tpu.memory_space<vmem>>, vector<2x4x128xf32>
    %c0_19 = arith.constant 0 : index
    %c0_20 = arith.constant 0 : index
    %c0_21 = arith.constant 0 : index
    %34 = vector.load %arg2[%c0_19, %c0_20, %c0_21] : memref<2x5x128xf32, #tpu.memory_space<vmem>>, vector<2x4x128xf32>
    tpu.vector_store %arg2[%c0_19, %c0_20, %c0_21], %33 {strides = array<i32>} : memref<2x5x128xf32, #tpu.memory_space<vmem>>, vector<2x4x128xf32>,
    %35 = vector.shape_cast %32 : vector<1x128xf32> to vector<1x1x128xf32>
    %36 = vector.shape_cast %35 : vector<1x1x128xf32> to vector<1x1x128xf32>
    %37 = vector.broadcast %36 : vector<1x1x128xf32> to vector<2x1x128xf32>
    %c0_22 = arith.constant 0 : index
    %c4 = arith.constant 4 : index
    %c0_23 = arith.constant 0 : index
    %38 = vector.load %arg2[%c0_22, %c4, %c0_23] : memref<2x5x128xf32, #tpu.memory_space<vmem>>, vector<2x1x128xf32>
    tpu.vector_store %arg2[%c0_22, %c4, %c0_23], %37 {strides = array<i32>} : memref<2x5x128xf32, #tpu.memory_space<vmem>>, vector<2x1x128xf32>,
    return
  }
  func.func @transform_0(%arg0: i32) -> (i32, i32, i32) {
    %c0_i32 = arith.constant 0 : i32
    %c0_i32_0 = arith.constant 0 : i32
    %c0_i32_1 = arith.constant 0 : i32
    return %c0_i32, %c0_i32_0, %arg0 : i32, i32, i32
  }
  func.func @transform_1(%arg0: i32) -> (i32, i32, i32) {
    %c0_i32 = arith.constant 0 : i32
    %c0_i32_0 = arith.constant 0 : i32
    %c0_i32_1 = arith.constant 0 : i32
    return %c0_i32, %c0_i32_0, %arg0 : i32, i32, i32
  }
}

</mosaic_0001>

<llo_original>
// kernel: tpu_custom_call.1
$region0: #{tpu_custom_call.1}
  #allocation0 [shape = 'u32[]', space=smem, size = 0x4, offset = 0x4, fixed_abs, tag = 'smem constant byte address 0x4 - core index']
  #allocation1 [shape = 'u32[144,128]{1,0:T(1,128)}', space=vmem, size = 0x12000, scoped, tag = 'internal scratch']
  %s0 = inlined_call_operand.hbm [shape: f32[2,4,256], index: 0, kind: input, shape index: {}]
  %s1 = inlined_call_operand.vmem [shape: f32[2,5,256], index: 1, kind: output, shape index: {}]
  %s2 = sld [smem:[#allocation0]]
  $region75: #{tpu_custom_call.1} parent=0
    _
  %s4 = ssub.s32 1, %s2
  %s5 = scalar_select 0, %s4, %s2
  $region1: #{tpu_custom_call.1} parent=0
    #allocation2 [shape = 'u8[8192]{0}', space=vmem, size = 0x2000, scoped, tag = 'input window, operand 0']
    #allocation3 [shape = 's32[2]{0}', space=sflag, size = 0x8, scoped, tag = 'scoped memory for tpu_custom_call.1']
    #allocation4 [shape = 'u8[16384]{0}', space=vmem, size = 0x4000, scoped, tag = 'output window, operand 0']
    %6 = vsyncpa [#allocation3], 0
    %s7 = scalar_lea.sflag [#allocation3], 1
    %8 = vsyncpa %s7, 0
    loop: start=0, step=1, limit=4
    $region2: #{tpu_custom_call.1} parent=1 // loop_pre_header
      _
    $region3: #{tpu_custom_call.1} parent=1 // loop_header
      %s10 = sphi 0, %s14
      %p11 = scmp.ge.s32.totalorder %s10, 4
      %s20 = sphi 0, %s22
      %s23 = sphi 0, %s20
      %s24 = sphi 0, %s23
      %s40 = sphi 0, %s24
      %s46 = sphi 0, %s48
      %s49 = sphi 0, %s46
      %s50 = sphi 0, %s49
      %s66 = sphi 0, %s50
    $region4: #{tpu_custom_call.1} parent=1 // loop_header_branch
      %13 = sbr.rel (%p11) target = $region8
    $region5: #{tpu_custom_call.1} parent=1 // loop_body
      %s15 = ssub.s32 %s10, 1
      %s16 = ssub.s32 %s10, 2
      %s17 = sadd.s32 %s10, 1
      %s18 = ssub.s32 %s10, %s17
      %p19 = scmp.eq.s32.totalorder %s18, 0
      %s21 = sadd.s32 %s20, 1
      %s22 = scalar_select %p19, %s20, %s21
      %p25 = pneg %p19
      %p26 = scmp.eq.s32.totalorder %s10, 1
      %p27 = por %p25, %p26
      %p28 = scmp.ne.s32.totalorder %s20, %s23
      %p29 = scmp.eq.s32.totalorder %s10, 0
      %p30 = por %p28, %p29
      %p31 = scmp.ne.s32.totalorder %s20, %s23
      %p32 = scmp.eq.s32.totalorder %s15, 1
      %p33 = por %p31, %p32
      %p34 = scmp.ne.s32.totalorder %s23, %s24
      %p35 = scmp.eq.s32.totalorder %s15, 0
      %p36 = por %p34, %p35
      %p37 = scmp.ne.s32.totalorder %s23, %s24
      %p38 = scmp.eq.s32.totalorder %s16, 1
      %p39 = por %p37, %p38
      %p41 = scmp.ne.s32.totalorder %s24, %s40
      %p42 = scmp.eq.s32.totalorder %s16, 0
      %p43 = por %p41, %p42
      %s44 = ssub.s32 %s10, %s17
      %p45 = scmp.eq.s32.totalorder %s44, 0
      %s47 = sadd.s32 %s46, 1
      %s48 = scalar_select %p45, %s46, %s47
      %p51 = pneg %p45
      %p52 = scmp.eq.s32.totalorder %s10, 1
      %p53 = por %p51, %p52
      %p54 = scmp.ne.s32.totalorder %s46, %s49
      %p55 = scmp.eq.s32.totalorder %s10, 0
      %p56 = por %p54, %p55
      %p57 = scmp.ne.s32.totalorder %s46, %s49
      %p58 = scmp.eq.s32.totalorder %s15, 1
      %p59 = por %p57, %p58
      %p60 = scmp.ne.s32.totalorder %s49, %s50
      %p61 = scmp.eq.s32.totalorder %s15, 0
      %p62 = por %p60, %p61
      %p63 = scmp.ne.s32.totalorder %s49, %s50
      %p64 = scmp.eq.s32.totalorder %s16, 1
      %p65 = por %p63, %p64
      %p67 = scmp.ne.s32.totalorder %s50, %s66
      %p68 = scmp.eq.s32.totalorder %s16, 0
      %p69 = por %p67, %p68
      %p70 = scmp.le.s32.totalorder 1, %s10
      %p71 = scmp.lt.s32.totalorder %s10, 3
      %p72 = pnand %p70, %p71
      %p73 = pneg %p72
      // Predicated region
      $region9: #{tpu_custom_call.1} parent=5 // pred_check
        _
      $region10: #{tpu_custom_call.1} parent=5 // pred_check_branch
        %75 = sbr.rel (%p72) target = $region12
      $region11: #{tpu_custom_call.1} parent=5 // pred_region
        %s76 = ssub.s32 %s10, 1
      $region12: #{tpu_custom_call.1} parent=5 // pred_fallthru
        _
      %p77 = scmp.lt.s32.totalorder %s10, 2
      // Predicated region
      $region13: #{tpu_custom_call.1} parent=5 // pred_check
        %p78 = pneg %p77
      $region14: #{tpu_custom_call.1} parent=5 // pred_check_branch
        %80 = sbr.rel (%p78) target = $region16
      $region15: #{tpu_custom_call.1} parent=5 // pred_region
        // Predicated region
        $region17: #{tpu_custom_call.1} parent=15 // pred_check
          %p81 = pneg %p30
        $region18: #{tpu_custom_call.1} parent=15 // pred_check_branch
          %83 = sbr.rel (%p81) target = $region20
        $region19: #{tpu_custom_call.1} parent=15 // pred_region
          %s84 = sand.u32 %s20, 1
          %s85 = scalar_lea.sflag [#allocation3], %s84
          %s86 = sand.u32 %s20, 1
          %s87 = smul.addr %s86, 8
          %s88 = scalar_lea.vmem [#allocation2], %s87
          %s90 = ssub.s32 128, 128
          %91 = vsyncadd %s85, %s90
          %s92 = smul.addr %s10, 64
          %s93 = scalar_lea.hbm %s0, %s92
          %s94 = sshll.u32 %s88, 4
          %s95 = int_to_ptr.vmem [resolvable:$true] %s94
          %100 = dma.hbm_to_vmem [thread:$0]  %s93, 128, %s95, %s85, 128, 64, 4
        $region20: #{tpu_custom_call.1} parent=15 // pred_fallthru
          _
      $region16: #{tpu_custom_call.1} parent=5 // pred_fallthru
        _
      %p101 = scmp.le.s32.totalorder 1, %s10
      %p102 = scmp.lt.s32.totalorder %s10, 3
      %p103 = pnand %p101, %p102
      %p104 = pneg %p103
      // Predicated region
      $region21: #{tpu_custom_call.1} parent=5 // pred_check
        _
      $region22: #{tpu_custom_call.1} parent=5 // pred_check_branch
        %106 = sbr.rel (%p103) target = $region24
      $region23: #{tpu_custom_call.1} parent=5 // pred_region
        %s107 = ssub.s32 %s10, 1
        %s108 = sand.u32 %s23, 1
        %s109 = scalar_lea.sflag [#allocation3], %s108
        %s110 = sand.u32 %s23, 1
        %s111 = smul.addr %s110, 8
        %s112 = scalar_lea.vmem [#allocation2], %s111
        // Predicated region
        $region25: #{tpu_custom_call.1} parent=23 // pred_check
          %p113 = pneg %p36
        $region26: #{tpu_custom_call.1} parent=23 // pred_check_branch
          %115 = sbr.rel (%p113) target = $region28
        $region27: #{tpu_custom_call.1} parent=23 // pred_region
          %116 = dma.done %s109, 128
        $region28: #{tpu_custom_call.1} parent=23 // pred_fallthru
          _
        %s117 = sand.u32 %s23, 1
        %s118 = scalar_lea.sflag [#allocation3], %s117
        %s119 = sand.u32 %s23, 1
        %s120 = smul.addr %s119, 8
        %s121 = scalar_lea.vmem [#allocation2], %s120
        %p122 = pneg %p36
        %p123 = pneg %p33
        %p124 = pneg %p62
        %p125 = pneg %p59
        %s126 = sand.u32 %s49, 1
        %s127 = sand.u32 %s49, 1
        %s128 = smul.addr %s127, 16
        %s129 = scalar_lea.vmem [#allocation4], %s128
        %v130 = vld [vmem:[%s112] sm:$0xf]
        %v131 = vadd.f32 %v130, 0.0
        %s132 = scalar_lea.vmem %s112, 4 [#allocation2]
        %v133 = vld [vmem:[%s132] sm:$0xf]
        %v134 = vadd.f32 %v131, %v133
        %v135 = vmul.f32 %v134, 0.5
        %v136 = vsub.f32 %v130, %v135
        %v137 = vmul.f32 %v136, %v136
        %v138 = vadd.f32 %v137, 0.0
        %v139 = vsub.f32 %v133, %v135
        %v140 = vmul.f32 %v139, %v139
        %v141 = vadd.f32 %v138, %v140
        %v142 = vmul.f32 %v141, 0.5
        %v143 = vadd.f32 %v142, 1e-08
        %v144 = vrsqrt.pop %v143
        %v145 = vmul.f32 %v143, %v144
        %vm146 = vcmp.eq.f32.partialorder %v143, inf
        %v147 = vsel %vm146, %v143, %v145
        %vm148 = vcmp.eq.f32.partialorder %v143, 0.0
        %v149 = vand.u32 %v143, 2147483648
        %v150 = vsel %vm148, %v149, %v147
        %vm151 = vcmask 1043456
        %v152 = vsel %vm151, %v150, 0.0
        %v153 = vrot.slane %v152, 4
        %v154 = vadd.f32 %v152, %v153
        %v155 = vrot.slane %v154, 2
        %v156 = vadd.f32 %v154, %v155
        %v157 = vrot.slane %v156, 1
        %v158 = vadd.f32 %v156, %v157
        %v159 = vrcp.pop 4.0
        %v160 = vmul.f32 %v158, %v159
        %v161 = vld [vmem:[%s112] sm:$0xf]
        %v162 = vld [vmem:[%s112 + $0x4] sm:$0xf]
        %163 = vst [vmem:[%s129] sm:$0xf] %v161
        %164 = vst [vmem:[%s129 + $0x8] sm:$0xf] %v162
        %165 = vst [vmem:[%s129 + $0x4] sm:$0x1] %v160
        %166 = vst [vmem:[%s129 + $0xc] sm:$0x1] %v160
        %s167 = sand.u32 %s49, 1
        %s168 = sand.u32 %s49, 1
        %s169 = smul.addr %s168, 16
        %s170 = scalar_lea.vmem [#allocation4], %s169
        // Predicated region
        $region29: #{tpu_custom_call.1} parent=23 // pred_check
          %p171 = pneg %p59
        $region30: #{tpu_custom_call.1} parent=23 // pred_check_branch
          %173 = sbr.rel (%p171) target = $region32
        $region31: #{tpu_custom_call.1} parent=23 // pred_region
          %s174 = smul.addr %s15, 8
          %s175 = scalar_lea.vmem %s1, %s174
          // Predicated region
          $region33: #{tpu_custom_call.1} parent=31 // pred_check
            _
          $region34: #{tpu_custom_call.1} parent=31 // pred_check_branch
            %177 = sbr.rel (0) target = $region36
          $region35: #{tpu_custom_call.1} parent=31 // pred_region
            // Predicated region
            $region37: #{tpu_custom_call.1} parent=35 // pred_check
              _
            $region38: #{tpu_custom_call.1} parent=35 // pred_check_branch
              %179 = sbr.rel (0) target = $region40
            $region39: #{tpu_custom_call.1} parent=35 // pred_region
              // Predicated region
              $region52: #{tpu_custom_call.1} parent=39 // pred_check
                _
              $region53: #{tpu_custom_call.1} parent=39 // pred_check_branch
                %197 = sbr.rel (0) target = $region55
              $region54: #{tpu_custom_call.1} parent=39 // pred_region
                loop: start=0, step=1, limit=1
                $region56: #{tpu_custom_call.1} parent=54 // loop_pre_header
                  _
                $region57: #{tpu_custom_call.1} parent=54 // loop_header
                  %s199 = sphi 0, %s203
                  %p200 = scmp.ge.s32.totalorder %s199, 1
                  %s204 = sphi %s170, %s170
                  %s205 = sphi %s175, %s175
                $region58: #{tpu_custom_call.1} parent=54 // loop_header_branch
                  %202 = sbr.rel (%p200) target = $region62
                $region59: #{tpu_custom_call.1} parent=54 // loop_body
                  %v206 = vld [vmem:[%s204] sm:$0xff]
                  %207 = vst [vmem:[%s205] sm:$0xff] %v206
                  %v208 = vld [vmem:[%s204 + $0x8] sm:$0xff]
                  %209 = vst [vmem:[%s205 + $0x10] sm:$0xff] %v208
                $region60: #{tpu_custom_call.1} parent=54 // loop_footer
                  %s203 = sadd.s32 1, %s199
                $region61: #{tpu_custom_call.1} parent=54 // loop_footer_branch
                  %198 = sbr.rel target = $region57
                $region62: #{tpu_custom_call.1} parent=54 // loop_exit
                  _
              $region55: #{tpu_custom_call.1} parent=39 // pred_fallthru
                _
              // Predicated region
              $region63: #{tpu_custom_call.1} parent=39 // pred_check
                _
              $region64: #{tpu_custom_call.1} parent=39 // pred_check_branch
                %211 = sbr.rel target = $region66
              $region65: #{tpu_custom_call.1} parent=39 // pred_region
                _
              $region66: #{tpu_custom_call.1} parent=39 // pred_fallthru
                _
            $region40: #{tpu_custom_call.1} parent=35 // pred_fallthru
              _
            // Predicated region
            $region41: #{tpu_custom_call.1} parent=35 // pred_check
              _
            $region42: #{tpu_custom_call.1} parent=35 // pred_check_branch
              %181 = sbr.rel target = $region44
            $region43: #{tpu_custom_call.1} parent=35 // pred_region
              %s183 = ssub.s32 256, 1
              loop: start=0, step=1, limit=1
              $region45: #{tpu_custom_call.1} parent=43 // loop_pre_header
                _
              $region46: #{tpu_custom_call.1} parent=43 // loop_header
                %s185 = sphi 0, %s189
                %p186 = scmp.ge.s32.totalorder %s185, 1
                %s190 = sphi %s170, %s170
                %s191 = sphi %s175, %s175
              $region47: #{tpu_custom_call.1} parent=43 // loop_header_branch
                %188 = sbr.rel (%p186) target = $region51
              $region48: #{tpu_custom_call.1} parent=43 // loop_body
                %v192 = vld [vmem:[%s190] sm:%s183]
                %193 = vst [vmem:[%s191] sm:%s183] %v192
                %v194 = vld [vmem:[%s190 + $0x8] sm:%s183]
                %195 = vst [vmem:[%s191 + $0x10] sm:%s183] %v194
              $region49: #{tpu_custom_call.1} parent=43 // loop_footer
                %s189 = sadd.s32 1, %s185
              $region50: #{tpu_custom_call.1} parent=43 // loop_footer_branch
                %184 = sbr.rel target = $region46
              $region51: #{tpu_custom_call.1} parent=43 // loop_exit
                _
            $region44: #{tpu_custom_call.1} parent=35 // pred_fallthru
              _
          $region36: #{tpu_custom_call.1} parent=31 // pred_fallthru
            _
          %212 = vnop
        $region32: #{tpu_custom_call.1} parent=23 // pred_fallthru
          _
      $region24: #{tpu_custom_call.1} parent=5 // pred_fallthru
        _
      %p213 = scmp.le.s32.totalorder 2, %s10
      // Predicated region
      $region67: #{tpu_custom_call.1} parent=5 // pred_check
        %p214 = pneg %p213
      $region68: #{tpu_custom_call.1} parent=5 // pred_check_branch
        %216 = sbr.rel (%p214) target = $region70
      $region69: #{tpu_custom_call.1} parent=5 // pred_region
        %s217 = ssub.s32 %s10, 2
        // Predicated region
        $region71: #{tpu_custom_call.1} parent=69 // pred_check
          %p218 = pneg %p65
        $region72: #{tpu_custom_call.1} parent=69 // pred_check_branch
          %220 = sbr.rel (%p218) target = $region74
        $region73: #{tpu_custom_call.1} parent=69 // pred_region
          %s221 = sand.u32 %s50, 1
          %s222 = sand.u32 %s50, 1
          %s223 = smul.addr %s222, 16
          %s224 = scalar_lea.vmem [#allocation4], %s223
        $region74: #{tpu_custom_call.1} parent=69 // pred_fallthru
          _
      $region70: #{tpu_custom_call.1} parent=5 // pred_fallthru
        _
    $region6: #{tpu_custom_call.1} parent=1 // loop_footer
      %s14 = sadd.s32 1, %s10
    $region7: #{tpu_custom_call.1} parent=1 // loop_footer_branch
      %9 = sbr.rel target = $region3
    $region8: #{tpu_custom_call.1} parent=1 // loop_exit
      _
    %225 = vsyncpa [#allocation3], 1
    %s226 = scalar_lea.sflag [#allocation3], 1
    %227 = vsyncpa %s226, 1

</llo_original>
